<compile_context>
chip_gen: v5e
topology: v5e:2x2
jax: 0.10.0
libtpu: 0.0.40
codegen_flags: <defaults>
</compile_context>

<pallas_src>
import math

import jax
import jax.numpy as jnp
from jax.experimental import pallas as pl
from jax.experimental.pallas import tpu as pltpu

EPS = 1e-5  # default eps of both nn.InstanceNorm2d and nn.BatchNorm2d


# ----------------------------------------------------------------------------
# Fused kernel: InstanceNorm2d(affine=False) + mean add-back + BatchNorm2d
# ----------------------------------------------------------------------------
def _in_bn_kernel_factory(eps):
    def kernel(x_ref, gamma_ref, beta_ref, o_ref):
        # x_ref : (CB, N, HW) f32 — channels on the grid-tiled leading dim,
        #                            batch on sublanes, spatial (HW) on lanes.
        # gamma_ref / beta_ref : (CB, 1, 1) f32 — BatchNorm affine parameters.
        x = x_ref[...]

        # ---- per-(c, n) instance statistics over the spatial (lane) axis ----
        m = jnp.mean(x, axis=2, keepdims=True)                       # (CB, N, 1)
        xc = x - m
        v = jnp.mean(xc * xc, axis=2, keepdims=True)                 # biased var
        y = xc * jax.lax.rsqrt(v + eps) + m                          # IN(x) + mean

        # ---- per-channel batch statistics over (n, hw) ----
        mu = jnp.mean(jnp.mean(y, axis=2, keepdims=True),
                      axis=1, keepdims=True)                         # (CB, 1, 1)
        yc = y - mu
        var = jnp.mean(jnp.mean(yc * yc, axis=2, keepdims=True),
                       axis=1, keepdims=True)                        # (CB, 1, 1)

        o_ref[...] = gamma_ref[...] * yc * jax.lax.rsqrt(var + eps) + beta_ref[...]

    return kernel


# ----------------------------------------------------------------------------
# Wrapper: NCHW in / NCHW out
# ----------------------------------------------------------------------------
def instance_norm2d_modified(x_nchw, gamma, beta, *,
                             eps=EPS, vmem_budget_bytes=16 * 1024 * 1024):
    """Forward pass of InstanceNorm2d_modified (training-mode BatchNorm)."""
    N, C, H, W = x_nchw.shape
    HW = H * W

    # Channel-major, spatial-in-lanes layout: (C, N, HW).
    xr = jnp.transpose(x_nchw, (1, 0, 2, 3)).reshape(C, N, HW).astype(jnp.float32)

    # Channels per grid block: keep (input + output) tiles, each double-buffered
    # by the Pallas pipeline, well under the VMEM budget (v7x: 64 MiB / TC).
    bytes_per_channel = N * HW * 4
    cb = max(1, min(C, vmem_budget_bytes // (4 * max(bytes_per_channel, 1))))
    # TODO(synk): if a single channel (N*HW*4 bytes) exceeds the VMEM budget, a
    # two-pass (sum/sumsq scratch then normalize) tiling over HW would be needed.

    c_pad = math.ceil(C / cb) * cb
    if c_pad != C:
        xr = jnp.pad(xr, ((0, c_pad - C), (0, 0), (0, 0)))
    g = jnp.pad(gamma.astype(jnp.float32), (0, c_pad - C),
                constant_values=1.0).reshape(c_pad, 1, 1)
    b = jnp.pad(beta.astype(jnp.float32), (0, c_pad - C)).reshape(c_pad, 1, 1)

    out = pl.pallas_call(
        _in_bn_kernel_factory(eps),
        out_shape=jax.ShapeDtypeStruct((c_pad, N, HW), jnp.float32),
        grid=(c_pad // cb,),
        in_specs=[
            pl.BlockSpec((cb, N, HW), lambda i: (i, 0, 0)),
            pl.BlockSpec((cb, 1, 1), lambda i: (i, 0, 0)),
            pl.BlockSpec((cb, 1, 1), lambda i: (i, 0, 0)),
        ],
        out_specs=pl.BlockSpec((cb, N, HW), lambda i: (i, 0, 0)),
        compiler_params=pltpu.CompilerParams(
            dimension_semantics=("parallel",),
        ),
    )(xr, g, b)

    out = out[:C].reshape(C, N, H, W)
    return jnp.transpose(out, (1, 0, 2, 3))  # back to NCHW


# ----------------------------------------------------------------------------
# Pure-JAX reference (mirrors the PyTorch forward) for self-validation
# ----------------------------------------------------------------------------
def _reference(x, gamma, beta, eps=EPS):
    N, C, H, W = x.shape
    xf = x.astype(jnp.float32).reshape(N, C, H * W)
    m = jnp.mean(xf, axis=-1, keepdims=True)
    v = jnp.mean((xf - m) ** 2, axis=-1, keepdims=True)
    y = ((xf - m) * jax.lax.rsqrt(v + eps) + m).reshape(N, C, H, W)
    mu = jnp.mean(y, axis=(0, 2, 3), keepdims=True)
    var = jnp.mean((y - mu) ** 2, axis=(0, 2, 3), keepdims=True)
    gg = gamma.reshape(1, C, 1, 1).astype(jnp.float32)
    bb = beta.reshape(1, C, 1, 1).astype(jnp.float32)
    return gg * (y - mu) * jax.lax.rsqrt(var + eps) + bb


if __name__ == "__main__":
    key = jax.random.PRNGKey(0)
    N, C, H, W = 2, 4, 16, 16
    x = jax.random.normal(key, (N, C, H, W), jnp.float32)

    # BatchNorm2d default parameters at init: weight = 1, bias = 0.
    gamma = jnp.ones((C,), jnp.float32)
    beta = jnp.zeros((C,), jnp.float32)

    fwd = jax.jit(instance_norm2d_modified)
    out = jax.block_until_ready(fwd(x, gamma, beta))

    assert out.shape == (N, C, H, W)
    assert bool(jnp.all(jnp.isfinite(out)))

    ref = _reference(x, gamma, beta)
    max_err = float(jnp.max(jnp.abs(out - ref)))
    assert max_err < 1e-4, f"max abs error vs reference: {max_err}"

    print("KERNEL_OK")
</pallas_src>

<mosaic_0001>
module attributes {stable_mosaic.version = 11 : i64} {
  func.func @kernel(%arg0: i32, %arg1: memref<4x2x256xf32, #tpu.memory_space<vmem>>, %arg2: memref<4x1x1xf32, #tpu.memory_space<vmem>>, %arg3: memref<4x1x1xf32, #tpu.memory_space<vmem>>, %arg4: memref<4x2x256xf32, #tpu.memory_space<vmem>>) attributes {dimension_semantics = [#tpu.dimension_semantics<parallel>], iteration_bounds = array<i64: 1>, scalar_prefetch = 0 : i64, scratch_operands = 0 : i64, tpu.core_type = #tpu.core_type<tc>, window_params = [{transform_indices = @transform_0, window_bounds = array<i64: 4, 2, 256>}, {transform_indices = @transform_1, window_bounds = array<i64: 4, 1, 1>}, {transform_indices = @transform_2, window_bounds = array<i64: 4, 1, 1>}, {transform_indices = @transform_3, window_bounds = array<i64: 4, 2, 256>}]} {
    %c0 = arith.constant 0 : index
    %c0_0 = arith.constant 0 : index
    %c0_1 = arith.constant 0 : index
    %0 = vector.load %arg1[%c0, %c0_0, %c0_1] : memref<4x2x256xf32, #tpu.memory_space<vmem>>, vector<4x2x256xf32>
    %cst = arith.constant dense<0.000000e+00> : vector<4x2xf32>
    %1 = vector.multi_reduction <add>, %0, %cst [2] : vector<4x2x256xf32> to vector<4x2xf32>
    %2 = vector.shape_cast %1 : vector<4x2xf32> to vector<4x2x1xf32>
    %cst_2 = arith.constant 2.560000e+02 : f32
    %3 = vector.broadcast %cst_2 : f32 to vector<4x2x1xf32>
    %4 = arith.divf %2, %3 : vector<4x2x1xf32>
    %5 = vector.broadcast %4 : vector<4x2x1xf32> to vector<4x2x256xf32>
    %6 = arith.subf %0, %5 : vector<4x2x256xf32>
    %7 = arith.mulf %6, %6 : vector<4x2x256xf32>
    %cst_3 = arith.constant dense<0.000000e+00> : vector<4x2xf32>
    %8 = vector.multi_reduction <add>, %7, %cst_3 [2] : vector<4x2x256xf32> to vector<4x2xf32>
    %9 = vector.shape_cast %8 : vector<4x2xf32> to vector<4x2x1xf32>
    %cst_4 = arith.constant 2.560000e+02 : f32
    %10 = vector.broadcast %cst_4 : f32 to vector<4x2x1xf32>
    %11 = arith.divf %9, %10 : vector<4x2x1xf32>
    %cst_5 = arith.constant 9.99999974E-6 : f32
    %12 = vector.broadcast %cst_5 : f32 to vector<4x2x1xf32>
    %13 = arith.addf %11, %12 : vector<4x2x1xf32>
    %14 = math.rsqrt %13 : vector<4x2x1xf32>
    %15 = vector.broadcast %14 : vector<4x2x1xf32> to vector<4x2x256xf32>
    %16 = arith.mulf %6, %15 : vector<4x2x256xf32>
    %17 = vector.broadcast %4 : vector<4x2x1xf32> to vector<4x2x256xf32>
    %18 = arith.addf %16, %17 : vector<4x2x256xf32>
    %cst_6 = arith.constant dense<0.000000e+00> : vector<4x2xf32>
    %19 = vector.multi_reduction <add>, %18, %cst_6 [2] : vector<4x2x256xf32> to vector<4x2xf32>
    %20 = vector.shape_cast %19 : vector<4x2xf32> to vector<4x2x1xf32>
    %cst_7 = arith.constant 2.560000e+02 : f32
    %21 = vector.broadcast %cst_7 : f32 to vector<4x2x1xf32>
    %22 = arith.divf %20, %21 : vector<4x2x1xf32>
    %cst_8 = arith.constant dense<0.000000e+00> : vector<4x1xf32>
    %23 = vector.multi_reduction <add>, %22, %cst_8 [1] : vector<4x2x1xf32> to vector<4x1xf32>
    %24 = vector.shape_cast %23 : vector<4x1xf32> to vector<4x1x1xf32>
    %cst_9 = arith.constant 2.000000e+00 : f32
    %25 = vector.broadcast %cst_9 : f32 to vector<4x1x1xf32>
    %26 = arith.divf %24, %25 : vector<4x1x1xf32>
    %27 = vector.broadcast %26 : vector<4x1x1xf32> to vector<4x2x256xf32>
    %28 = arith.subf %18, %27 : vector<4x2x256xf32>
    %29 = arith.mulf %28, %28 : vector<4x2x256xf32>
    %cst_10 = arith.constant dense<0.000000e+00> : vector<4x2xf32>
    %30 = vector.multi_reduction <add>, %29, %cst_10 [2] : vector<4x2x256xf32> to vector<4x2xf32>
    %31 = vector.shape_cast %30 : vector<4x2xf32> to vector<4x2x1xf32>
    %cst_11 = arith.constant 2.560000e+02 : f32
    %32 = vector.broadcast %cst_11 : f32 to vector<4x2x1xf32>
    %33 = arith.divf %31, %32 : vector<4x2x1xf32>
    %cst_12 = arith.constant dense<0.000000e+00> : vector<4x1xf32>
    %34 = vector.multi_reduction <add>, %33, %cst_12 [1] : vector<4x2x1xf32> to vector<4x1xf32>
    %35 = vector.shape_cast %34 : vector<4x1xf32> to vector<4x1x1xf32>
    %cst_13 = arith.constant 2.000000e+00 : f32
    %36 = vector.broadcast %cst_13 : f32 to vector<4x1x1xf32>
    %37 = arith.divf %35, %36 : vector<4x1x1xf32>
    %c0_14 = arith.constant 0 : index
    %c0_15 = arith.constant 0 : index
    %c0_16 = arith.constant 0 : index
    %38 = vector.load %arg2[%c0_14, %c0_15, %c0_16] : memref<4x1x1xf32, #tpu.memory_space<vmem>>, vector<4x1x1xf32>
    %39 = vector.broadcast %38 : vector<4x1x1xf32> to vector<4x2x256xf32>
    %40 = arith.mulf %39, %28 : vector<4x2x256xf32>
    %cst_17 = arith.constant 9.99999974E-6 : f32
    %41 = vector.broadcast %cst_17 : f32 to vector<4x1x1xf32>
    %42 = arith.addf %37, %41 : vector<4x1x1xf32>
    %43 = math.rsqrt %42 : vector<4x1x1xf32>
    %44 = vector.broadcast %43 : vector<4x1x1xf32> to vector<4x2x256xf32>
    %45 = arith.mulf %40, %44 : vector<4x2x256xf32>
    %c0_18 = arith.constant 0 : index
    %c0_19 = arith.constant 0 : index
    %c0_20 = arith.constant 0 : index
    %46 = vector.load %arg3[%c0_18, %c0_19, %c0_20] : memref<4x1x1xf32, #tpu.memory_space<vmem>>, vector<4x1x1xf32>
    %47 = vector.broadcast %46 : vector<4x1x1xf32> to vector<4x2x256xf32>
    %48 = arith.addf %45, %47 : vector<4x2x256xf32>
    %c0_21 = arith.constant 0 : index
    %c0_22 = arith.constant 0 : index
    %c0_23 = arith.constant 0 : index
    %49 = vector.load %arg4[%c0_21, %c0_22, %c0_23] : memref<4x2x256xf32, #tpu.memory_space<vmem>>, vector<4x2x256xf32>
    tpu.vector_store %arg4[%c0_21, %c0_22, %c0_23], %48 {strides = array<i32>} : memref<4x2x256xf32, #tpu.memory_space<vmem>>, vector<4x2x256xf32>,
    return
  }
  func.func @transform_0(%arg0: i32) -> (i32, i32, i32) {
    %c0_i32 = arith.constant 0 : i32
    %c0_i32_0 = arith.constant 0 : i32
    %c0_i32_1 = arith.constant 0 : i32
    return %arg0, %c0_i32, %c0_i32_0 : i32, i32, i32
  }
  func.func @transform_1(%arg0: i32) -> (i32, i32, i32) {
    %c0_i32 = arith.constant 0 : i32
    %c0_i32_0 = arith.constant 0 : i32
    %c0_i32_1 = arith.constant 0 : i32
    return %arg0, %c0_i32, %c0_i32_0 : i32, i32, i32
  }
  func.func @transform_2(%arg0: i32) -> (i32, i32, i32) {
    %c0_i32 = arith.constant 0 : i32
    %c0_i32_0 = arith.constant 0 : i32
    %c0_i32_1 = arith.constant 0 : i32
    return %arg0, %c0_i32, %c0_i32_0 : i32, i32, i32
  }
  func.func @transform_3(%arg0: i32) -> (i32, i32, i32) {
    %c0_i32 = arith.constant 0 : i32
    %c0_i32_0 = arith.constant 0 : i32
    %c0_i32_1 = arith.constant 0 : i32
    return %arg0, %c0_i32, %c0_i32_0 : i32, i32, i32
  }
}

</mosaic_0001>

<llo_original>
// kernel: instance_norm2d_modified.1
$region0: #{instance_norm2d_modified.1}
  #allocation0 [shape = 'u32[]', space=smem, size = 0x4, offset = 0x4, fixed_abs, tag = 'smem constant byte address 0x4 - core index']
  #allocation1 [shape = 'u32[72,128]{1,0:T(1,128)}', space=vmem, size = 0x9000, scoped, tag = 'internal scratch']
  %s0 = inlined_call_operand.vmem [shape: f32[4,2,256], index: 0, kind: input, shape index: {}]
  %s1 = inlined_call_operand.vmem [shape: f32[4,1,1], index: 1, kind: input, shape index: {}]
  %s2 = inlined_call_operand.vmem [shape: f32[4,1,1], index: 2, kind: input, shape index: {}]
  %s3 = inlined_call_operand.vmem [shape: f32[4,2,256], index: 3, kind: output, shape index: {}]
  %s4 = sld [smem:[#allocation0]]
  $region22: #{instance_norm2d_modified.1} parent=0
    _
  %s6 = ssub.s32 1, %s4
  %s7 = scalar_select 0, %s6, %s4
  // Predicated region
  $region2: #{instance_norm2d_modified.1} parent=0 // pred_check
    _
  $region3: #{instance_norm2d_modified.1} parent=0 // pred_check_branch
    %9 = sbr.rel (0) target = $region5
  $region4: #{instance_norm2d_modified.1} parent=0 // pred_region
    _
  $region5: #{instance_norm2d_modified.1} parent=0 // pred_fallthru
    _
  // Predicated region
  $region6: #{instance_norm2d_modified.1} parent=0 // pred_check
    _
  $region7: #{instance_norm2d_modified.1} parent=0 // pred_check_branch
    %11 = sbr.rel (0) target = $region9
  $region8: #{instance_norm2d_modified.1} parent=0 // pred_region
    _
  $region9: #{instance_norm2d_modified.1} parent=0 // pred_fallthru
    _
  // Predicated region
  $region10: #{instance_norm2d_modified.1} parent=0 // pred_check
    _
  $region11: #{instance_norm2d_modified.1} parent=0 // pred_check_branch
    %13 = sbr.rel (0) target = $region13
  $region12: #{instance_norm2d_modified.1} parent=0 // pred_region
    _
  $region13: #{instance_norm2d_modified.1} parent=0 // pred_fallthru
    _
  %v14 = vld [vmem:[%s0] sm:$0xf]
  %v15 = vld [vmem:[%s0 + $0x4] sm:$0xf]
  %v16 = vld [vmem:[%s0 + $0x8] sm:$0xf]
  %v17 = vld [vmem:[%s0 + $0xc] sm:$0xf]
  %22 = vst [vmem:[#allocation1] ss:$4 sm:$0xff] %v14
  %v23 = vld.sshfl [vmem:[#allocation1] sm:$0xff pattern:$0x73625140]
  %v24 = vld.sshfl [vmem:[#allocation1 + $0x8] sm:$0xff pattern:$0x73625140]
  %s25 = scalar_lea.vmem [#allocation1], 32
  %26 = vst [vmem:[%s25] ss:$4 sm:$0xff] %v15
  %v27 = vld.sshfl [vmem:[#allocation1 + $0x20] sm:$0xff pattern:$0x73625140]
  %v28 = vld.sshfl [vmem:[#allocation1 + $0x28] sm:$0xff pattern:$0x73625140]
  %29 = vst [vmem:[#allocation1] ss:$4 sm:$0xff] %v16
  %v30 = vld.sshfl [vmem:[#allocation1] sm:$0xff pattern:$0x73625140]
  %v31 = vld.sshfl [vmem:[#allocation1 + $0x8] sm:$0xff pattern:$0x73625140]
  %32 = vst [vmem:[%s25] ss:$4 sm:$0xff] %v17
  %v33 = vld.sshfl [vmem:[#allocation1 + $0x20] sm:$0xff pattern:$0x73625140]
  %v34 = vld.sshfl [vmem:[#allocation1 + $0x28] sm:$0xff pattern:$0x73625140]
  %vm43 = vcmask 1041408
  %v44 = vsel %vm43, %v23, 0.0
  %v45 = vsel %vm43, %v24, 0.0
  %v46 = vadd.f32 %v44, %v45
  %47 = vadd.xlane.f32.xlu0 %v46
  %v48 = vpop.xlane.xlu0 %47
  %v49 = vsel %vm43, %v27, 0.0
  %v50 = vsel %vm43, %v28, 0.0
  %v51 = vadd.f32 %v49, %v50
  %52 = vadd.xlane.f32.xlu0 %v51
  %v53 = vpop.xlane.xlu0 %52
  %v54 = vsel %vm43, %v30, 0.0
  %v55 = vsel %vm43, %v31, 0.0
  %v56 = vadd.f32 %v54, %v55
  %57 = vadd.xlane.f32.xlu0 %v56
  %v58 = vpop.xlane.xlu0 %57
  %v59 = vsel %vm43, %v33, 0.0
  %v60 = vsel %vm43, %v34, 0.0
  %v61 = vadd.f32 %v59, %v60
  %62 = vadd.xlane.f32.xlu0 %v61
  %v63 = vpop.xlane.xlu0 %62
  %v64 = vrcp.pop 256.0
  %v65 = vmul.f32 256.0, %v64
  %v66 = vsub.f32 1.0, %v65
  %v67 = vmul.f32 %v64, %v66
  %v68 = vadd.f32 %v64, %v67
  %vm69 = vweird.f32 %v64
  %v70 = vsel %vm69, %v64, %v68
  %v71 = vmul.f32 %v48, %v70
  %v72 = vmul.f32 %v53, %v70
  %v73 = vmul.f32 %v58, %v70
  %v74 = vmul.f32 %v63, %v70
  %v80 = vunpack.c.l.s4 269488144
  %v81 = vunpack.c.0.s8 %v80
  %v82 = vperm.slane %v71, %v81
  %v84 = vunpack.c.l.s4 269488144
  %v85 = vunpack.c.0.s8 %v84
  %v86 = vperm.slane %v72, %v85
  %v88 = vunpack.c.l.s4 269488144
  %v89 = vunpack.c.0.s8 %v88
  %v90 = vperm.slane %v73, %v89
  %v92 = vunpack.c.l.s4 269488144
  %v93 = vunpack.c.0.s8 %v92
  %v94 = vperm.slane %v74, %v93
  %v99 = vsub.f32 %v14, %v82
  %v100 = vsub.f32 %v15, %v86
  %v101 = vsub.f32 %v16, %v90
  %v102 = vsub.f32 %v17, %v94
  %v103 = vmul.f32 %v99, %v99
  %v104 = vmul.f32 %v100, %v100
  %v105 = vmul.f32 %v101, %v101
  %v106 = vmul.f32 %v102, %v102
  %111 = vst [vmem:[#allocation1] ss:$4 sm:$0xff] %v103
  %v112 = vld.sshfl [vmem:[#allocation1] sm:$0xff pattern:$0x73625140]
  %v113 = vld.sshfl [vmem:[#allocation1 + $0x8] sm:$0xff pattern:$0x73625140]
  %s114 = scalar_lea.vmem [#allocation1], 32
  %115 = vst [vmem:[%s114] ss:$4 sm:$0xff] %v104
  %v116 = vld.sshfl [vmem:[#allocation1 + $0x20] sm:$0xff pattern:$0x73625140]
  %v117 = vld.sshfl [vmem:[#allocation1 + $0x28] sm:$0xff pattern:$0x73625140]
  %118 = vst [vmem:[#allocation1] ss:$4 sm:$0xff] %v105
  %v119 = vld.sshfl [vmem:[#allocation1] sm:$0xff pattern:$0x73625140]
  %v120 = vld.sshfl [vmem:[#allocation1 + $0x8] sm:$0xff pattern:$0x73625140]
  %121 = vst [vmem:[%s114] ss:$4 sm:$0xff] %v106
  %v122 = vld.sshfl [vmem:[#allocation1 + $0x20] sm:$0xff pattern:$0x73625140]
  %v123 = vld.sshfl [vmem:[#allocation1 + $0x28] sm:$0xff pattern:$0x73625140]
  %v132 = vsel %vm43, %v112, 0.0
  %v133 = vsel %vm43, %v113, 0.0
  %v134 = vadd.f32 %v132, %v133
  %135 = vadd.xlane.f32.xlu0 %v134
  %v136 = vpop.xlane.xlu0 %135
  %v137 = vsel %vm43, %v116, 0.0
  %v138 = vsel %vm43, %v117, 0.0
  %v139 = vadd.f32 %v137, %v138
  %140 = vadd.xlane.f32.xlu0 %v139
  %v141 = vpop.xlane.xlu0 %140
  %v142 = vsel %vm43, %v119, 0.0
  %v143 = vsel %vm43, %v120, 0.0
  %v144 = vadd.f32 %v142, %v143
  %145 = vadd.xlane.f32.xlu0 %v144
  %v146 = vpop.xlane.xlu0 %145
  %v147 = vsel %vm43, %v122, 0.0
  %v148 = vsel %vm43, %v123, 0.0
  %v149 = vadd.f32 %v147, %v148
  %150 = vadd.xlane.f32.xlu0 %v149
  %v151 = vpop.xlane.xlu0 %150
  %v152 = vmul.f32 %v136, %v70
  %v153 = vmul.f32 %v141, %v70
  %v154 = vmul.f32 %v146, %v70
  %v155 = vmul.f32 %v151, %v70
  %v156 = vadd.f32 %v152, 1e-05
  %v157 = vadd.f32 %v153, 1e-05
  %v158 = vadd.f32 %v154, 1e-05
  %v159 = vadd.f32 %v155, 1e-05
  %v160 = vrsqrt.pop %v156
  %v161 = vmul.f32 %v160, %v156
  %v162 = vmul.f32 %v161, %v160
  %v163 = vmul.f32 0.5, %v162
  %v164 = vsub.f32 1.5, %v163
  %v165 = vmul.f32 %v160, %v164
  %vm166 = vweird.f32 %v156
  %vm167 = vweird.f32 %v160
  %vm168 = vmor %vm166, %vm167
  %v169 = vsel %vm168, %v160, %v165
  %v170 = vrsqrt.pop %v157
  %v171 = vmul.f32 %v170, %v157
  %v172 = vmul.f32 %v171, %v170
  %v173 = vmul.f32 0.5, %v172
  %v174 = vsub.f32 1.5, %v173
  %v175 = vmul.f32 %v170, %v174
  %vm176 = vweird.f32 %v157
  %vm177 = vweird.f32 %v170
  %vm178 = vmor %vm176, %vm177
  %v179 = vsel %vm178, %v170, %v175
  %v180 = vrsqrt.pop %v158
  %v181 = vmul.f32 %v180, %v158
  %v182 = vmul.f32 %v181, %v180
  %v183 = vmul.f32 0.5, %v182
  %v184 = vsub.f32 1.5, %v183
  %v185 = vmul.f32 %v180, %v184
  %vm186 = vweird.f32 %v158
  %vm187 = vweird.f32 %v180
  %vm188 = vmor %vm186, %vm187
  %v189 = vsel %vm188, %v180, %v185
  %v190 = vrsqrt.pop %v159
  %v191 = vmul.f32 %v190, %v159
  %v192 = vmul.f32 %v191, %v190
  %v193 = vmul.f32 0.5, %v192
  %v194 = vsub.f32 1.5, %v193
  %v195 = vmul.f32 %v190, %v194
  %vm196 = vweird.f32 %v159
  %vm197 = vweird.f32 %v190
  %vm198 = vmor %vm196, %vm197
  %v199 = vsel %vm198, %v190, %v195
  %v205 = vunpack.c.l.s4 269488144
  %v206 = vunpack.c.0.s8 %v205
  %v207 = vperm.slane %v169, %v206
  %v209 = vunpack.c.l.s4 269488144
  %v210 = vunpack.c.0.s8 %v209
  %v211 = vperm.slane %v179, %v210
  %v213 = vunpack.c.l.s4 269488144
  %v214 = vunpack.c.0.s8 %v213
  %v215 = vperm.slane %v189, %v214
  %v217 = vunpack.c.l.s4 269488144
  %v218 = vunpack.c.0.s8 %v217
  %v219 = vperm.slane %v199, %v218
  %v224 = vmul.f32 %v99, %v207
  %v225 = vmul.f32 %v100, %v211
  %v226 = vmul.f32 %v101, %v215
  %v227 = vmul.f32 %v102, %v219
  %v228 = vadd.f32 %v224, %v82
  %v229 = vadd.f32 %v225, %v86
  %v230 = vadd.f32 %v226, %v90
  %v231 = vadd.f32 %v227, %v94
  %236 = vst [vmem:[#allocation1] ss:$4 sm:$0xff] %v228
  %v237 = vld.sshfl [vmem:[#allocation1] sm:$0xff pattern:$0x73625140]
  %v238 = vld.sshfl [vmem:[#allocation1 + $0x8] sm:$0xff pattern:$0x73625140]
  %s239 = scalar_lea.vmem [#allocation1], 32
  %240 = vst [vmem:[%s239] ss:$4 sm:$0xff] %v229
  %v241 = vld.sshfl [vmem:[#allocation1 + $0x20] sm:$0xff pattern:$0x73625140]
  %v242 = vld.sshfl [vmem:[#allocation1 + $0x28] sm:$0xff pattern:$0x73625140]
  %243 = vst [vmem:[#allocation1] ss:$4 sm:$0xff] %v230
  %v244 = vld.sshfl [vmem:[#allocation1] sm:$0xff pattern:$0x73625140]
  %v245 = vld.sshfl [vmem:[#allocation1 + $0x8] sm:$0xff pattern:$0x73625140]
  %246 = vst [vmem:[%s239] ss:$4 sm:$0xff] %v231
  %v247 = vld.sshfl [vmem:[#allocation1 + $0x20] sm:$0xff pattern:$0x73625140]
  %v248 = vld.sshfl [vmem:[#allocation1 + $0x28] sm:$0xff pattern:$0x73625140]
  %v257 = vsel %vm43, %v237, 0.0
  %v258 = vsel %vm43, %v238, 0.0
  %v259 = vadd.f32 %v257, %v258
  %260 = vadd.xlane.f32.xlu0 %v259
  %v261 = vpop.xlane.xlu0 %260
  %v262 = vsel %vm43, %v241, 0.0
  %v263 = vsel %vm43, %v242, 0.0
  %v264 = vadd.f32 %v262, %v263
  %265 = vadd.xlane.f32.xlu0 %v264
  %v266 = vpop.xlane.xlu0 %265
  %v267 = vsel %vm43, %v244, 0.0
  %v268 = vsel %vm43, %v245, 0.0
  %v269 = vadd.f32 %v267, %v268
  %270 = vadd.xlane.f32.xlu0 %v269
  %v271 = vpop.xlane.xlu0 %270
  %v272 = vsel %vm43, %v247, 0.0
  %v273 = vsel %vm43, %v248, 0.0
  %v274 = vadd.f32 %v272, %v273
  %275 = vadd.xlane.f32.xlu0 %v274
  %v276 = vpop.xlane.xlu0 %275
  %v277 = vmul.f32 %v261, %v70
  %v278 = vmul.f32 %v266, %v70
  %v279 = vmul.f32 %v271, %v70
  %v280 = vmul.f32 %v276, %v70
  %v281 = vsel %vm43, %v277, 0.0
  %v282 = vrot.slane %v281, 4
  %v283 = vadd.f32 %v281, %v282
  %v284 = vrot.slane %v283, 2
  %v285 = vadd.f32 %v283, %v284
  %v286 = vrot.slane %v285, 1
  %v287 = vadd.f32 %v285, %v286
  %v288 = vsel %vm43, %v278, 0.0
  %v289 = vrot.slane %v288, 4
  %v290 = vadd.f32 %v288, %v289
  %v291 = vrot.slane %v290, 2
  %v292 = vadd.f32 %v290, %v291
  %v293 = vrot.slane %v292, 1
  %v294 = vadd.f32 %v292, %v293
  %v295 = vsel %vm43, %v279, 0.0
  %v296 = vrot.slane %v295, 4
  %v297 = vadd.f32 %v295, %v296
  %v298 = vrot.slane %v297, 2
  %v299 = vadd.f32 %v297, %v298
  %v300 = vrot.slane %v299, 1
  %v301 = vadd.f32 %v299, %v300
  %v302 = vsel %vm43, %v280, 0.0
  %v303 = vrot.slane %v302, 4
  %v304 = vadd.f32 %v302, %v303
  %v305 = vrot.slane %v304, 2
  %v306 = vadd.f32 %v304, %v305
  %v307 = vrot.slane %v306, 1
  %v308 = vadd.f32 %v306, %v307
  %v309 = vrcp.pop 2.0
  %v310 = vmul.f32 2.0, %v309
  %v311 = vsub.f32 1.0, %v310
  %v312 = vmul.f32 %v309, %v311
  %v313 = vadd.f32 %v309, %v312
  %vm314 = vweird.f32 %v309
  %v315 = vsel %vm314, %v309, %v313
  %v316 = vmul.f32 %v287, %v315
  %v317 = vmul.f32 %v294, %v315
  %v318 = vmul.f32 %v301, %v315
  %v319 = vmul.f32 %v308, %v315
  %v320 = vsub.f32 %v228, %v316
  %v321 = vsub.f32 %v229, %v317
  %v322 = vsub.f32 %v230, %v318
  %v323 = vsub.f32 %v231, %v319
  %v324 = vmul.f32 %v320, %v320
  %v325 = vmul.f32 %v321, %v321
  %v326 = vmul.f32 %v322, %v322
  %v327 = vmul.f32 %v323, %v323
  %332 = vst [vmem:[#allocation1] ss:$4 sm:$0xff] %v324
  %v333 = vld.sshfl [vmem:[#allocation1] sm:$0xff pattern:$0x73625140]
  %v334 = vld.sshfl [vmem:[#allocation1 + $0x8] sm:$0xff pattern:$0x73625140]
  %s335 = scalar_lea.vmem [#allocation1], 32
  %336 = vst [vmem:[%s335] ss:$4 sm:$0xff] %v325
  %v337 = vld.sshfl [vmem:[#allocation1 + $0x20] sm:$0xff pattern:$0x73625140]
  %v338 = vld.sshfl [vmem:[#allocation1 + $0x28] sm:$0xff pattern:$0x73625140]
  %339 = vst [vmem:[#allocation1] ss:$4 sm:$0xff] %v326
  %v340 = vld.sshfl [vmem:[#allocation1] sm:$0xff pattern:$0x73625140]
  %v341 = vld.sshfl [vmem:[#allocation1 + $0x8] sm:$0xff pattern:$0x73625140]
  %342 = vst [vmem:[%s335] ss:$4 sm:$0xff] %v327
  %v343 = vld.sshfl [vmem:[#allocation1 + $0x20] sm:$0xff pattern:$0x73625140]
  %v344 = vld.sshfl [vmem:[#allocation1 + $0x28] sm:$0xff pattern:$0x73625140]
  %v353 = vsel %vm43, %v333, 0.0
  %v354 = vsel %vm43, %v334, 0.0
  %v355 = vadd.f32 %v353, %v354
  %356 = vadd.xlane.f32.xlu0 %v355
  %v357 = vpop.xlane.xlu0 %356
  %v358 = vsel %vm43, %v337, 0.0
  %v359 = vsel %vm43, %v338, 0.0
  %v360 = vadd.f32 %v358, %v359
  %361 = vadd.xlane.f32.xlu0 %v360
  %v362 = vpop.xlane.xlu0 %361
  %v363 = vsel %vm43, %v340, 0.0
  %v364 = vsel %vm43, %v341, 0.0
  %v365 = vadd.f32 %v363, %v364
  %366 = vadd.xlane.f32.xlu0 %v365
  %v367 = vpop.xlane.xlu0 %366
  %v368 = vsel %vm43, %v343, 0.0
  %v369 = vsel %vm43, %v344, 0.0
  %v370 = vadd.f32 %v368, %v369
  %371 = vadd.xlane.f32.xlu0 %v370
  %v372 = vpop.xlane.xlu0 %371
  %v373 = vmul.f32 %v357, %v70
  %v374 = vmul.f32 %v362, %v70
  %v375 = vmul.f32 %v367, %v70
  %v376 = vmul.f32 %v372, %v70
  %v377 = vsel %vm43, %v373, 0.0
  %v378 = vrot.slane %v377, 4
  %v379 = vadd.f32 %v377, %v378
  %v380 = vrot.slane %v379, 2
  %v381 = vadd.f32 %v379, %v380
  %v382 = vrot.slane %v381, 1
  %v383 = vadd.f32 %v381, %v382
  %v384 = vsel %vm43, %v374, 0.0
  %v385 = vrot.slane %v384, 4
  %v386 = vadd.f32 %v384, %v385
  %v387 = vrot.slane %v386, 2
  %v388 = vadd.f32 %v386, %v387
  %v389 = vrot.slane %v388, 1
  %v390 = vadd.f32 %v388, %v389
  %v391 = vsel %vm43, %v375, 0.0
  %v392 = vrot.slane %v391, 4
  %v393 = vadd.f32 %v391, %v392
  %v394 = vrot.slane %v393, 2
  %v395 = vadd.f32 %v393, %v394
  %v396 = vrot.slane %v395, 1
  %v397 = vadd.f32 %v395, %v396
  %v398 = vsel %vm43, %v376, 0.0
  %v399 = vrot.slane %v398, 4
  %v400 = vadd.f32 %v398, %v399
  %v401 = vrot.slane %v400, 2
  %v402 = vadd.f32 %v400, %v401
  %v403 = vrot.slane %v402, 1
  %v404 = vadd.f32 %v402, %v403
  %v405 = vmul.f32 %v383, %v315
  %v406 = vmul.f32 %v390, %v315
  %v407 = vmul.f32 %v397, %v315
  %v408 = vmul.f32 %v404, %v315
  %v409 = vld [vmem:[%s1] sm:$0x1]
  %v410 = vld [vmem:[%s1 + $0x1] sm:$0x1]
  %v411 = vld [vmem:[%s1 + $0x2] sm:$0x1]
  %v412 = vld [vmem:[%s1 + $0x3] sm:$0x1]
  %v417 = vperm.slane %v409, 0
  %v418 = vperm.slane %v410, 0
  %v419 = vperm.slane %v411, 0
  %v420 = vperm.slane %v412, 0
  %421 = vset.pattern.permute.xlu0 0
  %422 = vperm.xlu0 %421, %v417
  %v423 = vpop.permute.xlu0 %422
  %425 = vset.pattern.permute.xlu0 0
  %426 = vperm.xlu0 %425, %v418
  %v427 = vpop.permute.xlu0 %426
  %429 = vset.pattern.permute.xlu0 0
  %430 = vperm.xlu0 %429, %v419
  %v431 = vpop.permute.xlu0 %430
  %433 = vset.pattern.permute.xlu0 0
  %434 = vperm.xlu0 %433, %v420
  %v435 = vpop.permute.xlu0 %434
  %v437 = vmul.f32 %v423, %v320
  %v438 = vmul.f32 %v427, %v321
  %v439 = vmul.f32 %v431, %v322
  %v440 = vmul.f32 %v435, %v323
  %v441 = vadd.f32 %v405, 1e-05
  %v442 = vadd.f32 %v406, 1e-05
  %v443 = vadd.f32 %v407, 1e-05
  %v444 = vadd.f32 %v408, 1e-05
  %v445 = vrsqrt.pop %v441
  %v446 = vmul.f32 %v445, %v441
  %v447 = vmul.f32 %v446, %v445
  %v448 = vmul.f32 0.5, %v447
  %v449 = vsub.f32 1.5, %v448
  %v450 = vmul.f32 %v445, %v449
  %vm451 = vweird.f32 %v441
  %vm452 = vweird.f32 %v445
  %vm453 = vmor %vm451, %vm452
  %v454 = vsel %vm453, %v445, %v450
  %v455 = vrsqrt.pop %v442
  %v456 = vmul.f32 %v455, %v442
  %v457 = vmul.f32 %v456, %v455
  %v458 = vmul.f32 0.5, %v457
  %v459 = vsub.f32 1.5, %v458
  %v460 = vmul.f32 %v455, %v459
  %vm461 = vweird.f32 %v442
  %vm462 = vweird.f32 %v455
  %vm463 = vmor %vm461, %vm462
  %v464 = vsel %vm463, %v455, %v460
  %v465 = vrsqrt.pop %v443
  %v466 = vmul.f32 %v465, %v443
  %v467 = vmul.f32 %v466, %v465
  %v468 = vmul.f32 0.5, %v467
  %v469 = vsub.f32 1.5, %v468
  %v470 = vmul.f32 %v465, %v469
  %vm471 = vweird.f32 %v443
  %vm472 = vweird.f32 %v465
  %vm473 = vmor %vm471, %vm472
  %v474 = vsel %vm473, %v465, %v470
  %v475 = vrsqrt.pop %v444
  %v476 = vmul.f32 %v475, %v444
  %v477 = vmul.f32 %v476, %v475
  %v478 = vmul.f32 0.5, %v477
  %v479 = vsub.f32 1.5, %v478
  %v480 = vmul.f32 %v475, %v479
  %vm481 = vweird.f32 %v444
  %vm482 = vweird.f32 %v475
  %vm483 = vmor %vm481, %vm482
  %v484 = vsel %vm483, %v475, %v480
  %v485 = vmul.f32 %v437, %v454
  %v486 = vmul.f32 %v438, %v464
  %v487 = vmul.f32 %v439, %v474
  %v488 = vmul.f32 %v440, %v484
  %v489 = vld [vmem:[%s2] sm:$0x1]
  %v490 = vld [vmem:[%s2 + $0x1] sm:$0x1]
  %v491 = vld [vmem:[%s2 + $0x2] sm:$0x1]
  %v492 = vld [vmem:[%s2 + $0x3] sm:$0x1]
  %v497 = vperm.slane %v489, 0
  %v498 = vperm.slane %v490, 0
  %v499 = vperm.slane %v491, 0
  %v500 = vperm.slane %v492, 0
  %501 = vset.pattern.permute.xlu0 0
  %502 = vperm.xlu0 %501, %v497
  %v503 = vpop.permute.xlu0 %502
  %505 = vset.pattern.permute.xlu0 0
  %506 = vperm.xlu0 %505, %v498
  %v507 = vpop.permute.xlu0 %506
  %509 = vset.pattern.permute.xlu0 0
  %510 = vperm.xlu0 %509, %v499
  %v511 = vpop.permute.xlu0 %510
  %513 = vset.pattern.permute.xlu0 0
  %514 = vperm.xlu0 %513, %v500
  %v515 = vpop.permute.xlu0 %514
  %v517 = vadd.f32 %v485, %v503
  %v518 = vadd.f32 %v486, %v507
  %v519 = vadd.f32 %v487, %v511
  %v520 = vadd.f32 %v488, %v515
  %521 = vst [vmem:[%s3] sm:$0xf] %v517
  %522 = vst [vmem:[%s3 + $0x4] sm:$0xf] %v518
  %523 = vst [vmem:[%s3 + $0x8] sm:$0xf] %v519
  %524 = vst [vmem:[%s3 + $0xc] sm:$0xf] %v520
  // Predicated region
  $region14: #{instance_norm2d_modified.1} parent=0 // pred_check
    _
  $region15: #{instance_norm2d_modified.1} parent=0 // pred_check_branch
    %526 = sbr.rel (0) target = $region17
  $region16: #{instance_norm2d_modified.1} parent=0 // pred_region
    _
  $region17: #{instance_norm2d_modified.1} parent=0 // pred_fallthru
    _
  // Predicated region
  $region18: #{instance_norm2d_modified.1} parent=0 // pred_check
    _
  $region19: #{instance_norm2d_modified.1} parent=0 // pred_check_branch
    %528 = sbr.rel (0) target = $region21
  $region20: #{instance_norm2d_modified.1} parent=0 // pred_region
    _
  $region21: #{instance_norm2d_modified.1} parent=0 // pred_fallthru
    _

</llo_original>
